<compile_context>
chip_gen: v7x
topology: tpu7x:2x2x1
jax: 0.10.0
libtpu: 0.0.40
codegen_flags: <defaults>
</compile_context>

<pallas_src>
import jax
import jax.numpy as jnp
from jax.experimental import pallas as pl
from jax.experimental.pallas import tpu as pltpu


def _mul_kernel(x_ref, c_ref, o_ref):
    # x_ref: (TM, WIDE) tile; c_ref: (1, WIDE) precomputed reciprocal row.
    # Broadcast multiply -> one vmul per vreg (no in-kernel divide/EUP chain).
    o_ref[...] = x_ref[...] * c_ref[...]


def _choose_layout(rows, w, itemsize):
    """Pick lane grouping k and row tile tm for a (rows, w) elementwise op."""
    # Lane-dense grouping: fold up to 32 rows into the lane dimension.
    k = 1
    for cand in (32, 16, 8, 4, 2):
        if rows % cand == 0:
            k = cand
            break
    r2 = rows // k
    wide = k * w

    # Row tile: target ~2 MiB per block, multiple of 8 rows.
    row_bytes = wide * itemsize
    target = max(8, (2 * 1024 * 1024) // row_bytes)
    target = max(8, (target // 8) * 8)

    if r2 <= target:
        tm = r2  # single block == full array (tiny inputs; exempt from 8x128)
    else:
        tm = target
        # Prefer a tile that divides r2 evenly (no partial last block).
        while tm > 8 and r2 % tm != 0:
            tm -= 8
        if r2 % tm != 0:
            tm = target  # uneven grid; Pallas masks the tail block's writes
    return k, r2, wide, tm


def test_net_forward(x, constant1):
    """Pallas implementation of testNet.forward: x / constant1 (broadcast).

    x: (B, C, H, 128) float32
    constant1: (1, 1, 1, 128) float32
    """
    B, C, H, W = x.shape
    assert constant1.shape == (1, 1, 1, W)

    rows = B * C * H
    k, r2, wide, tm = _choose_layout(rows, W, x.dtype.itemsize)

    # Free reshape (contiguous buffer): lane-dense 2-D view, no data movement.
    x2d = x.reshape(r2, wide)

    # Hoist the divide: reciprocal of 128 elements computed once, tiled to the
    # lane-dense width so the kernel broadcast works row-wise.
    inv_c = (1.0 / constant1).reshape(1, W).astype(x.dtype)
    c2d = jnp.tile(inv_c, (1, k))

    grid = (pl.cdiv(r2, tm),)

    out2d = pl.pallas_call(
        _mul_kernel,
        out_shape=jax.ShapeDtypeStruct((r2, wide), x.dtype),
        grid_spec=pltpu.PrefetchScalarGridSpec(
            num_scalar_prefetch=0,
            grid=grid,
            in_specs=[
                pl.BlockSpec((tm, wide), lambda i: (i, 0)),
                pl.BlockSpec((1, wide), lambda i: (0, 0)),
            ],
            out_specs=pl.BlockSpec((tm, wide), lambda i: (i, 0)),
        ),
        compiler_params=pltpu.CompilerParams(
            dimension_semantics=("parallel",)),
    )(x2d, c2d)

    return out2d.reshape(B, C, H, W)


if __name__ == "__main__":
    key = jax.random.PRNGKey(0)
    k_x, k_c = jax.random.split(key)

    # Small shapes consistent with the module: last dim must be 128 to match
    # the (1, 1, 1, 128) constant.
    B, C, H, W = 2, 4, 16, 128
    x = jax.random.normal(k_x, (B, C, H, W), dtype=jnp.float32)
    # torch.rand -> uniform [0, 1); keep away from 0 to avoid blow-ups.
    constant1 = jax.random.uniform(
        k_c, (1, 1, 1, 128), dtype=jnp.float32, minval=0.1, maxval=1.0)

    out = test_net_forward(x, constant1)
    out = jax.block_until_ready(out)

    # Sanity check against plain JAX broadcasting division.  Multiplying by a
    # precomputed reciprocal differs from a true divide by ~1 ulp, so use a
    # slightly looser rtol than exact-match.
    ref = x / constant1
    assert out.shape == (B, C, H, W)
    assert jnp.allclose(out, ref, rtol=1e-5, atol=1e-6)

    print("KERNEL_OK")
</pallas_src>

<mosaic_0001>
module attributes {stable_mosaic.version = 11 : i64} {
  func.func @_mul_kernel(%arg0: i32, %arg1: memref<4x4096xf32, #tpu.memory_space<vmem>>, %arg2: memref<1x4096xf32, #tpu.memory_space<vmem>>, %arg3: memref<4x4096xf32, #tpu.memory_space<vmem>>) attributes {dimension_semantics = [#tpu.dimension_semantics<parallel>], iteration_bounds = array<i64: 1>, scalar_prefetch = 0 : i64, scratch_operands = 0 : i64, tpu.core_type = #tpu.core_type<tc>, window_params = [{transform_indices = @transform_0, window_bounds = array<i64: 4, 4096>}, {pipeline_mode = #tpu.pipeline_mode<synchronous>, transform_indices = @transform_1, window_bounds = array<i64: 1, 4096>}, {transform_indices = @transform_2, window_bounds = array<i64: 4, 4096>}]} {
    %c0 = arith.constant 0 : index
    %c0_0 = arith.constant 0 : index
    %0 = vector.load %arg1[%c0, %c0_0] : memref<4x4096xf32, #tpu.memory_space<vmem>>, vector<4x4096xf32>
    %c0_1 = arith.constant 0 : index
    %c0_2 = arith.constant 0 : index
    %1 = vector.load %arg2[%c0_1, %c0_2] : memref<1x4096xf32, #tpu.memory_space<vmem>>, vector<1x4096xf32>
    %2 = vector.broadcast %1 : vector<1x4096xf32> to vector<4x4096xf32>
    %3 = arith.mulf %0, %2 : vector<4x4096xf32>
    %c0_3 = arith.constant 0 : index
    %c0_4 = arith.constant 0 : index
    %4 = vector.load %arg3[%c0_3, %c0_4] : memref<4x4096xf32, #tpu.memory_space<vmem>>, vector<4x4096xf32>
    tpu.vector_store %arg3[%c0_3, %c0_4], %3 {strides = array<i32>} : memref<4x4096xf32, #tpu.memory_space<vmem>>, vector<4x4096xf32>,
    return
  }
  func.func @transform_0(%arg0: i32) -> (i32, i32) {
    %c0_i32 = arith.constant 0 : i32
    %c0_i32_0 = arith.constant 0 : i32
    return %arg0, %c0_i32 : i32, i32
  }
  func.func @transform_1(%arg0: i32) -> (i32, i32) {
    %c0_i32 = arith.constant 0 : i32
    %c0_i32_0 = arith.constant 0 : i32
    %c0_i32_1 = arith.constant 0 : i32
    return %c0_i32, %c0_i32_0 : i32, i32
  }
  func.func @transform_2(%arg0: i32) -> (i32, i32) {
    %c0_i32 = arith.constant 0 : i32
    %c0_i32_0 = arith.constant 0 : i32
    return %arg0, %c0_i32 : i32, i32
  }
}

</mosaic_0001>

<llo_original>
// kernel: tpu_custom_call.1
$region0: #{tpu_custom_call.1}
  #allocation0 [shape = 'u32[]', space=smem, size = 0x4, offset = 0x4, fixed_abs, tag = 'smem constant byte address 0x4 - core index']
  #allocation1 [shape = 'u32[144,128]{1,0:T(1,128)}', space=vmem, size = 0x12000, scoped, tag = 'internal scratch']
  %s0 = inlined_call_operand.hbm [shape: f32[4,4096], index: 0, kind: input, shape index: {}]
  %s1 = inlined_call_operand.hbm [shape: f32[1,4096], index: 1, kind: input, shape index: {}]
  %s2 = inlined_call_operand.hbm [shape: f32[4,4096], index: 2, kind: output, shape index: {}]
  %s3 = sld [smem:[#allocation0]]
  $region26: #{tpu_custom_call.1} parent=0
    _
  %s5 = ssub.s32 1, %s3
  %s6 = scalar_select 0, %s5, %s3
  $region1: #{tpu_custom_call.1} parent=0
    #allocation2 [shape = 'u8[65536]{0}', space=vmem, size = 0x10000, scoped, tag = 'input window, operand 0, single buffered']
    #allocation3 [shape = 's32[1]{0}', space=sflag, size = 0x4, scoped, tag = 'scoped memory for tpu_custom_call.1']
    #allocation4 [shape = 's32[1]{0}', space=sflag, size = 0x4, scoped, tag = 'scoped memory for tpu_custom_call.1']
    #allocation5 [shape = 'u8[16384]{0}', space=vmem, size = 0x4000, scoped, tag = 'input window, operand 1, single buffered']
    #allocation6 [shape = 's32[1]{0}', space=sflag, size = 0x4, scoped, tag = 'scoped memory for tpu_custom_call.1']
    #allocation7 [shape = 'u8[65536]{0}', space=vmem, size = 0x10000, scoped, tag = 'output window, operand 0, single buffered']
    %7 = vsyncpa [#allocation3], 0
    %8 = vsyncpa [#allocation6], 0
    %9 = vsyncpa [#allocation4], 0
    // Predicated region
    $region2: #{tpu_custom_call.1} parent=1 // pred_check
      _
    $region3: #{tpu_custom_call.1} parent=1 // pred_check_branch
      %11 = sbr.rel (0) target = $region5
    $region4: #{tpu_custom_call.1} parent=1 // pred_region
      %s13 = ssub.s32 2048, 2048
      %14 = vsyncadd [#allocation3], %s13
      %s16 = sshll.u32 [#allocation2], 4
      %s17 = int_to_ptr.vmem [resolvable:$true] %s16
      %19 = dma.hbm_to_vmem [thread:$0]  %s0, 2048, %s17, [#allocation3]
    $region5: #{tpu_custom_call.1} parent=1 // pred_fallthru
      _
    // Predicated region
    $region6: #{tpu_custom_call.1} parent=1 // pred_check
      _
    $region7: #{tpu_custom_call.1} parent=1 // pred_check_branch
      %21 = sbr.rel (0) target = $region9
    $region8: #{tpu_custom_call.1} parent=1 // pred_region
      %s23 = ssub.s32 512, 512
      %24 = vsyncadd [#allocation6], %s23
      %s26 = sshll.u32 [#allocation5], 4
      %s27 = int_to_ptr.vmem [resolvable:$true] %s26
      %29 = dma.hbm_to_vmem [thread:$0]  %s1, 512, %s27, [#allocation6]
    $region9: #{tpu_custom_call.1} parent=1 // pred_fallthru
      _
    // Predicated region
    $region10: #{tpu_custom_call.1} parent=1 // pred_check
      _
    $region11: #{tpu_custom_call.1} parent=1 // pred_check_branch
      %31 = sbr.rel (0) target = $region13
    $region12: #{tpu_custom_call.1} parent=1 // pred_region
      %32 = dma.done [#allocation3], 2048
    $region13: #{tpu_custom_call.1} parent=1 // pred_fallthru
      _
    // Predicated region
    $region14: #{tpu_custom_call.1} parent=1 // pred_check
      _
    $region15: #{tpu_custom_call.1} parent=1 // pred_check_branch
      %34 = sbr.rel (0) target = $region17
    $region16: #{tpu_custom_call.1} parent=1 // pred_region
      %35 = dma.done [#allocation6], 512
    $region17: #{tpu_custom_call.1} parent=1 // pred_fallthru
      _
    %v36 = vld [vmem:[#allocation2] sm:$0xff]
    %v37 = vld [vmem:[#allocation2 + $0x8] sm:$0xff]
    %v38 = vld [vmem:[#allocation2 + $0x10] sm:$0xff]
    %v39 = vld [vmem:[#allocation2 + $0x18] sm:$0xff]
    %v40 = vld [vmem:[#allocation2 + $0x20] sm:$0xff]
    %v41 = vld [vmem:[#allocation2 + $0x28] sm:$0xff]
    %v42 = vld [vmem:[#allocation2 + $0x30] sm:$0xff]
    %v43 = vld [vmem:[#allocation2 + $0x38] sm:$0xff]
    %v44 = vld [vmem:[#allocation2 + $0x40] sm:$0xff]
    %v45 = vld [vmem:[#allocation2 + $0x48] sm:$0xff]
    %v46 = vld [vmem:[#allocation2 + $0x50] sm:$0xff]
    %v47 = vld [vmem:[#allocation2 + $0x58] sm:$0xff]
    %v48 = vld [vmem:[#allocation2 + $0x60] sm:$0xff]
    %v49 = vld [vmem:[#allocation2 + $0x68] sm:$0xff]
    %v50 = vld [vmem:[#allocation2 + $0x70] sm:$0xff]
    %v51 = vld [vmem:[#allocation2 + $0x78] sm:$0xff]
    %v52 = vld [vmem:[#allocation5] sm:$0xff]
    %v53 = vld [vmem:[#allocation5 + $0x8] sm:$0xff]
    %v54 = vld [vmem:[#allocation5 + $0x10] sm:$0xff]
    %v55 = vld [vmem:[#allocation5 + $0x18] sm:$0xff]
    %v60 = vlaneseq
    %v61 = vshrl.u32 %v60, 7
    %v62 = vsub.s32 0, %v61
    %v63 = vrot.slane %v52, %v62
    %v64 = vlaneseq
    %v65 = vshrl.u32 %v64, 7
    %v66 = vsub.s32 1, %v65
    %v67 = vrot.slane %v52, %v66
    %v68 = vlaneseq
    %v69 = vshrl.u32 %v68, 7
    %v70 = vsub.s32 2, %v69
    %v71 = vrot.slane %v52, %v70
    %v72 = vlaneseq
    %v73 = vshrl.u32 %v72, 7
    %v74 = vsub.s32 3, %v73
    %v75 = vrot.slane %v52, %v74
    %v76 = vlaneseq
    %v77 = vshrl.u32 %v76, 7
    %v78 = vsub.s32 4, %v77
    %v79 = vrot.slane %v52, %v78
    %v80 = vlaneseq
    %v81 = vshrl.u32 %v80, 7
    %v82 = vsub.s32 5, %v81
    %v83 = vrot.slane %v52, %v82
    %v84 = vlaneseq
    %v85 = vshrl.u32 %v84, 7
    %v86 = vsub.s32 6, %v85
    %v87 = vrot.slane %v52, %v86
    %v88 = vlaneseq
    %v89 = vshrl.u32 %v88, 7
    %v90 = vsub.s32 7, %v89
    %v91 = vrot.slane %v52, %v90
    %v92 = vlaneseq
    %v93 = vshrl.u32 %v92, 7
    %v94 = vsub.s32 0, %v93
    %v95 = vrot.slane %v53, %v94
    %v96 = vlaneseq
    %v97 = vshrl.u32 %v96, 7
    %v98 = vsub.s32 1, %v97
    %v99 = vrot.slane %v53, %v98
    %v100 = vlaneseq
    %v101 = vshrl.u32 %v100, 7
    %v102 = vsub.s32 2, %v101
    %v103 = vrot.slane %v53, %v102
    %v104 = vlaneseq
    %v105 = vshrl.u32 %v104, 7
    %v106 = vsub.s32 3, %v105
    %v107 = vrot.slane %v53, %v106
    %v108 = vlaneseq
    %v109 = vshrl.u32 %v108, 7
    %v110 = vsub.s32 4, %v109
    %v111 = vrot.slane %v53, %v110
    %v112 = vlaneseq
    %v113 = vshrl.u32 %v112, 7
    %v114 = vsub.s32 5, %v113
    %v115 = vrot.slane %v53, %v114
    %v116 = vlaneseq
    %v117 = vshrl.u32 %v116, 7
    %v118 = vsub.s32 6, %v117
    %v119 = vrot.slane %v53, %v118
    %v120 = vlaneseq
    %v121 = vshrl.u32 %v120, 7
    %v122 = vsub.s32 7, %v121
    %v123 = vrot.slane %v53, %v122
    %v124 = vlaneseq
    %v125 = vshrl.u32 %v124, 7
    %v126 = vsub.s32 0, %v125
    %v127 = vrot.slane %v54, %v126
    %v128 = vlaneseq
    %v129 = vshrl.u32 %v128, 7
    %v130 = vsub.s32 1, %v129
    %v131 = vrot.slane %v54, %v130
    %v132 = vlaneseq
    %v133 = vshrl.u32 %v132, 7
    %v134 = vsub.s32 2, %v133
    %v135 = vrot.slane %v54, %v134
    %v136 = vlaneseq
    %v137 = vshrl.u32 %v136, 7
    %v138 = vsub.s32 3, %v137
    %v139 = vrot.slane %v54, %v138
    %v140 = vlaneseq
    %v141 = vshrl.u32 %v140, 7
    %v142 = vsub.s32 4, %v141
    %v143 = vrot.slane %v54, %v142
    %v144 = vlaneseq
    %v145 = vshrl.u32 %v144, 7
    %v146 = vsub.s32 5, %v145
    %v147 = vrot.slane %v54, %v146
    %v148 = vlaneseq
    %v149 = vshrl.u32 %v148, 7
    %v150 = vsub.s32 6, %v149
    %v151 = vrot.slane %v54, %v150
    %v152 = vlaneseq
    %v153 = vshrl.u32 %v152, 7
    %v154 = vsub.s32 7, %v153
    %v155 = vrot.slane %v54, %v154
    %v156 = vlaneseq
    %v157 = vshrl.u32 %v156, 7
    %v158 = vsub.s32 0, %v157
    %v159 = vrot.slane %v55, %v158
    %v160 = vlaneseq
    %v161 = vshrl.u32 %v160, 7
    %v162 = vsub.s32 1, %v161
    %v163 = vrot.slane %v55, %v162
    %v164 = vlaneseq
    %v165 = vshrl.u32 %v164, 7
    %v166 = vsub.s32 2, %v165
    %v167 = vrot.slane %v55, %v166
    %v168 = vlaneseq
    %v169 = vshrl.u32 %v168, 7
    %v170 = vsub.s32 3, %v169
    %v171 = vrot.slane %v55, %v170
    %v172 = vlaneseq
    %v173 = vshrl.u32 %v172, 7
    %v174 = vsub.s32 4, %v173
    %v175 = vrot.slane %v55, %v174
    %v176 = vlaneseq
    %v177 = vshrl.u32 %v176, 7
    %v178 = vsub.s32 5, %v177
    %v179 = vrot.slane %v55, %v178
    %v180 = vlaneseq
    %v181 = vshrl.u32 %v180, 7
    %v182 = vsub.s32 6, %v181
    %v183 = vrot.slane %v55, %v182
    %v184 = vlaneseq
    %v185 = vshrl.u32 %v184, 7
    %v186 = vsub.s32 7, %v185
    %v187 = vrot.slane %v55, %v186
    %v188 = vcombine.low %v63, %v67
    %v189 = vcombine.low %v71, %v75
    %v190 = vcombine.low %v79, %v83
    %v191 = vcombine.low %v87, %v91
    %v192 = vcombine.low %v95, %v99
    %v193 = vcombine.low %v103, %v107
    %v194 = vcombine.low %v111, %v115
    %v195 = vcombine.low %v119, %v123
    %v196 = vcombine.low %v127, %v131
    %v197 = vcombine.low %v135, %v139
    %v198 = vcombine.low %v143, %v147
    %v199 = vcombine.low %v151, %v155
    %v200 = vcombine.low %v159, %v163
    %v201 = vcombine.low %v167, %v171
    %v202 = vcombine.low %v175, %v179
    %v203 = vcombine.low %v183, %v187
    %v220 = vmul.f32 %v36, %v188
    %v221 = vmul.f32 %v37, %v189
    %v222 = vmul.f32 %v38, %v190
    %v223 = vmul.f32 %v39, %v191
    %v224 = vmul.f32 %v40, %v192
    %v225 = vmul.f32 %v41, %v193
    %v226 = vmul.f32 %v42, %v194
    %v227 = vmul.f32 %v43, %v195
    %v228 = vmul.f32 %v44, %v196
    %v229 = vmul.f32 %v45, %v197
    %v230 = vmul.f32 %v46, %v198
    %v231 = vmul.f32 %v47, %v199
    %v232 = vmul.f32 %v48, %v200
    %v233 = vmul.f32 %v49, %v201
    %v234 = vmul.f32 %v50, %v202
    %v235 = vmul.f32 %v51, %v203
    %236 = vst [vmem:[#allocation7] sm:$0xff] %v220
    %237 = vst [vmem:[#allocation7 + $0x8] sm:$0xff] %v221
    %238 = vst [vmem:[#allocation7 + $0x10] sm:$0xff] %v222
    %239 = vst [vmem:[#allocation7 + $0x18] sm:$0xff] %v223
    %240 = vst [vmem:[#allocation7 + $0x20] sm:$0xff] %v224
    %241 = vst [vmem:[#allocation7 + $0x28] sm:$0xff] %v225
    %242 = vst [vmem:[#allocation7 + $0x30] sm:$0xff] %v226
    %243 = vst [vmem:[#allocation7 + $0x38] sm:$0xff] %v227
    %244 = vst [vmem:[#allocation7 + $0x40] sm:$0xff] %v228
    %245 = vst [vmem:[#allocation7 + $0x48] sm:$0xff] %v229
    %246 = vst [vmem:[#allocation7 + $0x50] sm:$0xff] %v230
    %247 = vst [vmem:[#allocation7 + $0x58] sm:$0xff] %v231
    %248 = vst [vmem:[#allocation7 + $0x60] sm:$0xff] %v232
    %249 = vst [vmem:[#allocation7 + $0x68] sm:$0xff] %v233
    %250 = vst [vmem:[#allocation7 + $0x70] sm:$0xff] %v234
    %251 = vst [vmem:[#allocation7 + $0x78] sm:$0xff] %v235
    // Predicated region
    $region18: #{tpu_custom_call.1} parent=1 // pred_check
      _
    $region19: #{tpu_custom_call.1} parent=1 // pred_check_branch
      %253 = sbr.rel (0) target = $region21
    $region20: #{tpu_custom_call.1} parent=1 // pred_region
      %s255 = ssub.s32 2048, 2048
      %256 = vsyncadd [#allocation4], %s255
      %s258 = sshll.u32 [#allocation7], 4
      %s259 = int_to_ptr.vmem [resolvable:$true] %s258
      %261 = dma.vmem_to_hbm [thread:$0]  %s259, 2048, %s2, [#allocation4]
    $region21: #{tpu_custom_call.1} parent=1 // pred_fallthru
      _
    // Predicated region
    $region22: #{tpu_custom_call.1} parent=1 // pred_check
      _
    $region23: #{tpu_custom_call.1} parent=1 // pred_check_branch
      %263 = sbr.rel (0) target = $region25
    $region24: #{tpu_custom_call.1} parent=1 // pred_region
      %264 = dma.done [#allocation4], 2048
    $region25: #{tpu_custom_call.1} parent=1 // pred_fallthru
      _
    %265 = vsyncpa [#allocation3], 1
    %266 = vsyncpa [#allocation6], 1
    %267 = vsyncpa [#allocation4], 1

</llo_original>
